<compile_context>
chip_gen: v7x
topology: tpu7x:2x2x1
jax: 0.10.0
libtpu: 0.0.40
codegen_flags: <defaults>
</compile_context>

<pallas_src>
import functools

import numpy as np
import jax
import jax.numpy as jnp
from jax.experimental import pallas as pl
from jax.experimental.pallas import tpu as pltpu


# ----------------------------------------------------------------------------
# Pallas kernel: fused (Linear -> ReLU) x 3 over one batch tile.
# ----------------------------------------------------------------------------
def ffnet_kernel(x_ref, w1t_ref, w2t_ref, w3t_ref, o_ref):
    # x_ref:   (tm, d_in)   activation tile (input dtype, e.g. f32)
    # w*t_ref: (in, out)    full weight matrices (pre-transposed, compute dtype)
    # o_ref:   (tm, d_out)  output tile (f32)
    # MXU operands are cast to the weight dtype (bf16 by default) in-kernel;
    # accumulation and ReLU stay in f32 (cheap on the VPU on every gen).
    x = x_ref[...].astype(w1t_ref.dtype)
    h = jnp.dot(x, w1t_ref[...], preferred_element_type=jnp.float32)
    h = jnp.maximum(h, 0.0)
    h = jnp.dot(h.astype(w2t_ref.dtype), w2t_ref[...],
                preferred_element_type=jnp.float32)
    h = jnp.maximum(h, 0.0)
    h = jnp.dot(h.astype(w3t_ref.dtype), w3t_ref[...],
                preferred_element_type=jnp.float32)
    h = jnp.maximum(h, 0.0)
    o_ref[...] = h.astype(o_ref.dtype)


# ----------------------------------------------------------------------------
# Wrapper
# ----------------------------------------------------------------------------
def _cdiv(a, b):
    return -(-a // b)


def _round_up(x, m):
    return _cdiv(x, m) * m


def prepare_ffnet_params(w1, w2, w3, compute_dtype=jnp.bfloat16):
    """One-time weight prep (hoisted out of the per-call path).

    Takes PyTorch-convention weights (out_features, in_features), returns them
    transposed and cast to the MXU operand dtype so the kernel computes
    x @ W^T as x @ Wt.
    """
    w1t = jnp.asarray(w1, dtype=jnp.float32).T.astype(compute_dtype)  # (d_in, h1)
    w2t = jnp.asarray(w2, dtype=jnp.float32).T.astype(compute_dtype)  # (h1,  h2)
    w3t = jnp.asarray(w3, dtype=jnp.float32).T.astype(compute_dtype)  # (h2,  d_out)
    return w1t, w2t, w3t


def _choose_tm(B, cap=1024):
    """Batch tile: nearly-full last tile, cap 1024, >=2 grid steps when B>=16
    (keeps both v7x TensorCores busy under ("parallel",))."""
    B8 = _round_up(max(B, 1), 8)
    n_tiles = max(_cdiv(B8, cap), 1)
    if B8 >= 16:
        n_tiles = max(n_tiles, 2)
    return _round_up(_cdiv(B8, n_tiles), 8)


@functools.partial(jax.jit, static_argnames=("tm",))
def ffnet_forward(x_nchw, w1t, w2t, w3t, *, tm=None):
    """FFNet forward pass.

    Args:
      x_nchw: (B, ...) input; flattened to (B, d_in) like torch.flatten(x, 1).
              Passing it already in bf16 additionally halves the input DMA.
      w1t, w2t, w3t: outputs of prepare_ffnet_params.
      tm: optional batch tile override (multiple of 8).
    Returns:
      (B, d_out) float32 output.
    """
    B = x_nchw.shape[0]
    d_in = int(np.prod(x_nchw.shape[1:]))
    d_out = w3t.shape[1]

    # glue: torch.flatten(x, 1) — free metadata op.
    x = x_nchw.reshape(B, d_in)

    if tm is None:
        tm = _choose_tm(B)
    grid = _cdiv(B, tm)
    B_pad = grid * tm
    if B_pad != B:
        # Only the (< tm) ragged batch tail is padded; feature dims stay exact.
        x = jnp.pad(x, ((0, B_pad - B), (0, 0)))

    out = pl.pallas_call(
        ffnet_kernel,
        out_shape=jax.ShapeDtypeStruct((B_pad, d_out), jnp.float32),
        grid_spec=pl.GridSpec(
            grid=(grid,),
            in_specs=[
                # Activations: full-extent (unpadded) feature dim.
                pl.BlockSpec((tm, d_in), lambda i: (i, 0)),
                # Weights: whole matrices, constant index -> stay resident.
                pl.BlockSpec(w1t.shape, lambda i: (0, 0)),
                pl.BlockSpec(w2t.shape, lambda i: (0, 0)),
                pl.BlockSpec(w3t.shape, lambda i: (0, 0)),
            ],
            # Output: true d_out width (masked stores, but 8x fewer bytes than
            # lane-padding to 128 and no post-slice).
            out_specs=pl.BlockSpec((tm, d_out), lambda i: (i, 0)),
        ),
        compiler_params=pltpu.CompilerParams(
            # Batch tiles are independent -> megacore-shardable on v7x.
            dimension_semantics=("parallel",),
        ),
    )(x, w1t, w2t, w3t)

    return out[:B] if B_pad != B else out


# ----------------------------------------------------------------------------
# Pure-JAX reference (mirrors the PyTorch forward exactly, full f32 precision).
# ----------------------------------------------------------------------------
def ffnet_reference(x_nchw, w1, w2, w3):
    x = x_nchw.reshape(x_nchw.shape[0], -1).astype(jnp.float32)
    for w in (w1, w2, w3):
        x = jnp.maximum(
            jnp.dot(x, w.T, precision=jax.lax.Precision.HIGHEST), 0.0)
    return x


def _init_linear_weight(key, out_features, in_features):
    # Deterministic init mimicking nn.Linear's default U(-1/sqrt(in), 1/sqrt(in)).
    bound = 1.0 / np.sqrt(in_features)
    return jax.random.uniform(
        key, (out_features, in_features), dtype=jnp.float32,
        minval=-bound, maxval=bound)


if __name__ == "__main__":
    key = jax.random.PRNGKey(0)
    k_x, k_w1, k_w2, k_w3 = jax.random.split(key, 4)

    # FFNet.relu_net(sizes=[32, 128, 128, 16], bias=False)
    sizes = [32, 128, 128, 16]
    B, C, H, W = 16, 2, 4, 4          # C*H*W == sizes[0] == 32
    x = jax.random.normal(k_x, (B, C, H, W), dtype=jnp.float32)

    w1 = _init_linear_weight(k_w1, sizes[1], sizes[0])   # (128, 32)
    w2 = _init_linear_weight(k_w2, sizes[2], sizes[1])   # (128, 128)
    w3 = _init_linear_weight(k_w3, sizes[3], sizes[2])   # (16, 128)

    ref = np.asarray(jax.block_until_ready(ffnet_reference(x, w1, w2, w3)))

    # Default path: bf16 MXU operands (fast on every gen; f32 accumulation).
    p_bf16 = prepare_ffnet_params(w1, w2, w3, compute_dtype=jnp.bfloat16)
    out_bf16 = jax.block_until_ready(ffnet_forward(x, *p_bf16))
    np.testing.assert_allclose(np.asarray(out_bf16), ref, rtol=3e-2, atol=3e-2)

    # f32-operand path (loose tolerance: TPU MXU f32 matmul precision varies
    # by generation; v7x has no native f32 MXU path).
    p_f32 = prepare_ffnet_params(w1, w2, w3, compute_dtype=jnp.float32)
    out_f32 = jax.block_until_ready(ffnet_forward(x, *p_f32))
    np.testing.assert_allclose(np.asarray(out_f32), ref, rtol=1e-2, atol=1e-2)

    print("KERNEL_OK")
</pallas_src>

<mosaic_0001>
module attributes {stable_mosaic.version = 11 : i64} {
  func.func @ffnet_kernel(%arg0: i32, %arg1: memref<8x32xf32, #tpu.memory_space<vmem>>, %arg2: memref<32x128xbf16, #tpu.memory_space<vmem>>, %arg3: memref<128x128xbf16, #tpu.memory_space<vmem>>, %arg4: memref<128x16xbf16, #tpu.memory_space<vmem>>, %arg5: memref<8x16xf32, #tpu.memory_space<vmem>>) attributes {dimension_semantics = [#tpu.dimension_semantics<parallel>], iteration_bounds = array<i64: 2>, scalar_prefetch = 0 : i64, scratch_operands = 0 : i64, tpu.core_type = #tpu.core_type<tc>, window_params = [{transform_indices = @transform_0, window_bounds = array<i64: 8, 32>}, {pipeline_mode = #tpu.pipeline_mode<synchronous>, transform_indices = @transform_1, window_bounds = array<i64: 32, 128>}, {pipeline_mode = #tpu.pipeline_mode<synchronous>, transform_indices = @transform_2, window_bounds = array<i64: 128, 128>}, {pipeline_mode = #tpu.pipeline_mode<synchronous>, transform_indices = @transform_3, window_bounds = array<i64: 128, 16>}, {transform_indices = @transform_4, window_bounds = array<i64: 8, 16>}]} {
    %c0 = arith.constant 0 : index
    %c0_0 = arith.constant 0 : index
    %0 = vector.load %arg1[%c0, %c0_0] : memref<8x32xf32, #tpu.memory_space<vmem>>, vector<8x32xf32>
    %1 = arith.truncf %0 : vector<8x32xf32> to vector<8x32xbf16>
    %c0_1 = arith.constant 0 : index
    %c0_2 = arith.constant 0 : index
    %2 = vector.load %arg2[%c0_1, %c0_2] : memref<32x128xbf16, #tpu.memory_space<vmem>>, vector<32x128xbf16>
    %cst = arith.constant dense<0.000000e+00> : vector<8x128xf32>
    %3 = tpu.matmul %1, %2, %cst {dimension_numbers = #tpu.dot_dimension_numbers<[1], [0], [0], [1], [0, 0, 1, 1], [], []>} : vector<8x32xbf16>, vector<32x128xbf16>, vector<8x128xf32> -> vector<8x128xf32>
    %cst_3 = arith.constant 0.000000e+00 : f32
    %4 = vector.broadcast %cst_3 : f32 to vector<8x128xf32>
    %5 = arith.maximumf %3, %4 : vector<8x128xf32>
    %6 = arith.truncf %5 : vector<8x128xf32> to vector<8x128xbf16>
    %c0_4 = arith.constant 0 : index
    %c0_5 = arith.constant 0 : index
    %7 = vector.load %arg3[%c0_4, %c0_5] : memref<128x128xbf16, #tpu.memory_space<vmem>>, vector<128x128xbf16>
    %cst_6 = arith.constant dense<0.000000e+00> : vector<8x128xf32>
    %8 = tpu.matmul %6, %7, %cst_6 {dimension_numbers = #tpu.dot_dimension_numbers<[1], [0], [0], [1], [0, 0, 1, 1], [], []>} : vector<8x128xbf16>, vector<128x128xbf16>, vector<8x128xf32> -> vector<8x128xf32>
    %cst_7 = arith.constant 0.000000e+00 : f32
    %9 = vector.broadcast %cst_7 : f32 to vector<8x128xf32>
    %10 = arith.maximumf %8, %9 : vector<8x128xf32>
    %11 = arith.truncf %10 : vector<8x128xf32> to vector<8x128xbf16>
    %c0_8 = arith.constant 0 : index
    %c0_9 = arith.constant 0 : index
    %12 = vector.load %arg4[%c0_8, %c0_9] : memref<128x16xbf16, #tpu.memory_space<vmem>>, vector<128x16xbf16>
    %cst_10 = arith.constant dense<0.000000e+00> : vector<8x16xf32>
    %13 = tpu.matmul %11, %12, %cst_10 {dimension_numbers = #tpu.dot_dimension_numbers<[1], [0], [0], [1], [0, 0, 1, 1], [], []>} : vector<8x128xbf16>, vector<128x16xbf16>, vector<8x16xf32> -> vector<8x16xf32>
    %cst_11 = arith.constant 0.000000e+00 : f32
    %14 = vector.broadcast %cst_11 : f32 to vector<8x16xf32>
    %15 = arith.maximumf %13, %14 : vector<8x16xf32>
    %c0_12 = arith.constant 0 : index
    %c0_13 = arith.constant 0 : index
    %16 = vector.load %arg5[%c0_12, %c0_13] : memref<8x16xf32, #tpu.memory_space<vmem>>, vector<8x16xf32>
    tpu.vector_store %arg5[%c0_12, %c0_13], %15 {strides = array<i32>} : memref<8x16xf32, #tpu.memory_space<vmem>>, vector<8x16xf32>,
    return
  }
  func.func @transform_0(%arg0: i32) -> (i32, i32) {
    %c0_i32 = arith.constant 0 : i32
    %c0_i32_0 = arith.constant 0 : i32
    return %arg0, %c0_i32 : i32, i32
  }
  func.func @transform_1(%arg0: i32) -> (i32, i32) {
    %c0_i32 = arith.constant 0 : i32
    %c0_i32_0 = arith.constant 0 : i32
    %c0_i32_1 = arith.constant 0 : i32
    return %c0_i32, %c0_i32_0 : i32, i32
  }
  func.func @transform_2(%arg0: i32) -> (i32, i32) {
    %c0_i32 = arith.constant 0 : i32
    %c0_i32_0 = arith.constant 0 : i32
    %c0_i32_1 = arith.constant 0 : i32
    return %c0_i32, %c0_i32_0 : i32, i32
  }
  func.func @transform_3(%arg0: i32) -> (i32, i32) {
    %c0_i32 = arith.constant 0 : i32
    %c0_i32_0 = arith.constant 0 : i32
    %c0_i32_1 = arith.constant 0 : i32
    return %c0_i32, %c0_i32_0 : i32, i32
  }
  func.func @transform_4(%arg0: i32) -> (i32, i32) {
    %c0_i32 = arith.constant 0 : i32
    %c0_i32_0 = arith.constant 0 : i32
    return %arg0, %c0_i32 : i32, i32
  }
}

</mosaic_0001>

<llo_original>
// kernel: ffnet_forward.1
$region0: #{ffnet_forward.1}
  #allocation0 [shape = 'u32[]', space=smem, size = 0x4, offset = 0x4, fixed_abs, tag = 'smem constant byte address 0x4 - core index']
  #allocation1 [shape = 'u32[144,128]{1,0:T(1,128)}', space=vmem, size = 0x12000, scoped, tag = 'internal scratch']
  %s0 = inlined_call_operand.vmem [shape: f32[16,32], index: 0, kind: input, shape index: {}]
  %s1 = inlined_call_operand.vmem [shape: bf16[32,128], index: 1, kind: input, shape index: {}]
  %s2 = inlined_call_operand.vmem [shape: bf16[128,128], index: 2, kind: input, shape index: {}]
  %s3 = inlined_call_operand.vmem [shape: bf16[128,16], index: 3, kind: input, shape index: {}]
  %s4 = inlined_call_operand.hbm [shape: f32[16,16], index: 4, kind: output, shape index: {}]
  %s5 = sld [smem:[#allocation0]]
  $region49: #{ffnet_forward.1} parent=0
    _
  %s7 = ssub.s32 1, %s5
  %s8 = scalar_select 0, %s7, %s5
  $region1: #{ffnet_forward.1} parent=0
    #allocation2 [shape = 'u8[8192]{0}', space=vmem, size = 0x2000, scoped, tag = 'output window, operand 0']
    #allocation3 [shape = 's32[2]{0}', space=sflag, size = 0x8, scoped, tag = 'scoped memory for ffnet_forward.1']
    %9 = vsyncpa [#allocation3], 0
    %s10 = scalar_lea.sflag [#allocation3], 1
    %11 = vsyncpa %s10, 0
    loop: start=0, step=1, limit=4
    $region2: #{ffnet_forward.1} parent=1 // loop_pre_header
      _
    $region3: #{ffnet_forward.1} parent=1 // loop_header
      %s13 = sphi 0, %s17
      %p14 = scmp.ge.s32.totalorder %s13, 4
      %s23 = sphi 0, %s25
      %s26 = sphi 0, %s23
      %s27 = sphi 0, %s26
      %s43 = sphi 0, %s27
      %s47 = sphi 0, %s47
      %s49 = sphi 0, %s47
      %s50 = sphi 0, %s49
      %s64 = sphi 0, %s50
      %s68 = sphi 0, %s68
      %s70 = sphi 0, %s68
      %s71 = sphi 0, %s70
      %s85 = sphi 0, %s71
      %s89 = sphi 0, %s89
      %s91 = sphi 0, %s89
      %s92 = sphi 0, %s91
      %s106 = sphi 0, %s92
      %s112 = sphi 0, %s114
      %s115 = sphi 0, %s112
      %s116 = sphi 0, %s115
      %s132 = sphi 0, %s116
    $region4: #{ffnet_forward.1} parent=1 // loop_header_branch
      %16 = sbr.rel (%p14) target = $region8
    $region5: #{ffnet_forward.1} parent=1 // loop_body
      %s18 = ssub.s32 %s13, 1
      %s19 = ssub.s32 %s13, 2
      %s20 = sadd.s32 %s13, 1
      %s21 = ssub.s32 %s13, %s20
      %p22 = scmp.eq.s32.totalorder %s21, 0
      %s24 = sadd.s32 %s23, 1
      %s25 = scalar_select %p22, %s23, %s24
      %p28 = pneg %p22
      %p29 = scmp.eq.s32.totalorder %s13, 1
      %p30 = por %p28, %p29
      %p31 = scmp.ne.s32.totalorder %s23, %s26
      %p32 = scmp.eq.s32.totalorder %s13, 0
      %p33 = por %p31, %p32
      %p34 = scmp.ne.s32.totalorder %s23, %s26
      %p35 = scmp.eq.s32.totalorder %s18, 1
      %p36 = por %p34, %p35
      %p37 = scmp.ne.s32.totalorder %s26, %s27
      %p38 = scmp.eq.s32.totalorder %s18, 0
      %p39 = por %p37, %p38
      %p40 = scmp.ne.s32.totalorder %s26, %s27
      %p41 = scmp.eq.s32.totalorder %s19, 1
      %p42 = por %p40, %p41
      %p44 = scmp.ne.s32.totalorder %s27, %s43
      %p45 = scmp.eq.s32.totalorder %s19, 0
      %p46 = por %p44, %p45
      %s48 = sadd.s32 %s47, 1
      %p51 = scmp.eq.s32.totalorder %s13, 1
      %p52 = scmp.ne.s32.totalorder %s47, %s49
      %p53 = scmp.eq.s32.totalorder %s13, 0
      %p54 = por %p52, %p53
      %p55 = scmp.ne.s32.totalorder %s47, %s49
      %p56 = scmp.eq.s32.totalorder %s18, 1
      %p57 = por %p55, %p56
      %p58 = scmp.ne.s32.totalorder %s49, %s50
      %p59 = scmp.eq.s32.totalorder %s18, 0
      %p60 = por %p58, %p59
      %p61 = scmp.ne.s32.totalorder %s49, %s50
      %p62 = scmp.eq.s32.totalorder %s19, 1
      %p63 = por %p61, %p62
      %p65 = scmp.ne.s32.totalorder %s50, %s64
      %p66 = scmp.eq.s32.totalorder %s19, 0
      %p67 = por %p65, %p66
      %s69 = sadd.s32 %s68, 1
      %p72 = scmp.eq.s32.totalorder %s13, 1
      %p73 = scmp.ne.s32.totalorder %s68, %s70
      %p74 = scmp.eq.s32.totalorder %s13, 0
      %p75 = por %p73, %p74
      %p76 = scmp.ne.s32.totalorder %s68, %s70
      %p77 = scmp.eq.s32.totalorder %s18, 1
      %p78 = por %p76, %p77
      %p79 = scmp.ne.s32.totalorder %s70, %s71
      %p80 = scmp.eq.s32.totalorder %s18, 0
      %p81 = por %p79, %p80
      %p82 = scmp.ne.s32.totalorder %s70, %s71
      %p83 = scmp.eq.s32.totalorder %s19, 1
      %p84 = por %p82, %p83
      %p86 = scmp.ne.s32.totalorder %s71, %s85
      %p87 = scmp.eq.s32.totalorder %s19, 0
      %p88 = por %p86, %p87
      %s90 = sadd.s32 %s89, 1
      %p93 = scmp.eq.s32.totalorder %s13, 1
      %p94 = scmp.ne.s32.totalorder %s89, %s91
      %p95 = scmp.eq.s32.totalorder %s13, 0
      %p96 = por %p94, %p95
      %p97 = scmp.ne.s32.totalorder %s89, %s91
      %p98 = scmp.eq.s32.totalorder %s18, 1
      %p99 = por %p97, %p98
      %p100 = scmp.ne.s32.totalorder %s91, %s92
      %p101 = scmp.eq.s32.totalorder %s18, 0
      %p102 = por %p100, %p101
      %p103 = scmp.ne.s32.totalorder %s91, %s92
      %p104 = scmp.eq.s32.totalorder %s19, 1
      %p105 = por %p103, %p104
      %p107 = scmp.ne.s32.totalorder %s92, %s106
      %p108 = scmp.eq.s32.totalorder %s19, 0
      %p109 = por %p107, %p108
      %s110 = ssub.s32 %s13, %s20
      %p111 = scmp.eq.s32.totalorder %s110, 0
      %s113 = sadd.s32 %s112, 1
      %s114 = scalar_select %p111, %s112, %s113
      %p117 = pneg %p111
      %p118 = scmp.eq.s32.totalorder %s13, 1
      %p119 = por %p117, %p118
      %p120 = scmp.ne.s32.totalorder %s112, %s115
      %p121 = scmp.eq.s32.totalorder %s13, 0
      %p122 = por %p120, %p121
      %p123 = scmp.ne.s32.totalorder %s112, %s115
      %p124 = scmp.eq.s32.totalorder %s18, 1
      %p125 = por %p123, %p124
      %p126 = scmp.ne.s32.totalorder %s115, %s116
      %p127 = scmp.eq.s32.totalorder %s18, 0
      %p128 = por %p126, %p127
      %p129 = scmp.ne.s32.totalorder %s115, %s116
      %p130 = scmp.eq.s32.totalorder %s19, 1
      %p131 = por %p129, %p130
      %p133 = scmp.ne.s32.totalorder %s116, %s132
      %p134 = scmp.eq.s32.totalorder %s19, 0
      %p135 = por %p133, %p134
      %p136 = scmp.le.s32.totalorder 1, %s13
      %p137 = scmp.lt.s32.totalorder %s13, 3
      %p138 = pnand %p136, %p137
      %p139 = pneg %p138
      // Predicated region
      $region9: #{ffnet_forward.1} parent=5 // pred_check
        _
      $region10: #{ffnet_forward.1} parent=5 // pred_check_branch
        %141 = sbr.rel (%p138) target = $region12
      $region11: #{ffnet_forward.1} parent=5 // pred_region
        %s142 = ssub.s32 %s13, 1
        // Predicated region
        $region13: #{ffnet_forward.1} parent=11 // pred_check
          %p143 = pneg %p60
        $region14: #{ffnet_forward.1} parent=11 // pred_check_branch
          %145 = sbr.rel (%p143) target = $region16
        $region15: #{ffnet_forward.1} parent=11 // pred_region
          _
        $region16: #{ffnet_forward.1} parent=11 // pred_fallthru
          _
        // Predicated region
        $region17: #{ffnet_forward.1} parent=11 // pred_check
          %p146 = pneg %p81
        $region18: #{ffnet_forward.1} parent=11 // pred_check_branch
          %148 = sbr.rel (%p146) target = $region20
        $region19: #{ffnet_forward.1} parent=11 // pred_region
          _
        $region20: #{ffnet_forward.1} parent=11 // pred_fallthru
          _
        // Predicated region
        $region21: #{ffnet_forward.1} parent=11 // pred_check
          %p149 = pneg %p102
        $region22: #{ffnet_forward.1} parent=11 // pred_check_branch
          %151 = sbr.rel (%p149) target = $region24
        $region23: #{ffnet_forward.1} parent=11 // pred_region
          _
        $region24: #{ffnet_forward.1} parent=11 // pred_fallthru
          _
      $region12: #{ffnet_forward.1} parent=5 // pred_fallthru
        _
      %p152 = scmp.lt.s32.totalorder %s13, 2
      // Predicated region
      $region25: #{ffnet_forward.1} parent=5 // pred_check
        %p153 = pneg %p152
      $region26: #{ffnet_forward.1} parent=5 // pred_check_branch
        %155 = sbr.rel (%p153) target = $region28
      $region27: #{ffnet_forward.1} parent=5 // pred_region
        // Predicated region
        $region29: #{ffnet_forward.1} parent=27 // pred_check
          %p156 = pneg %p33
        $region30: #{ffnet_forward.1} parent=27 // pred_check_branch
          %158 = sbr.rel (%p156) target = $region32
        $region31: #{ffnet_forward.1} parent=27 // pred_region
          %p159 = scmp.lt.s32.totalorder %s13, 1
          %s160 = scalar_select %p159, %s13, 1
          %s161 = smul.addr %s160, 8
          %s162 = scalar_lea.vmem %s0, %s161
        $region32: #{ffnet_forward.1} parent=27 // pred_fallthru
          _
      $region28: #{ffnet_forward.1} parent=5 // pred_fallthru
        _
      %p163 = scmp.le.s32.totalorder 1, %s13
      %p164 = scmp.lt.s32.totalorder %s13, 3
      %p165 = pnand %p163, %p164
      %p166 = pneg %p165
      // Predicated region
      $region33: #{ffnet_forward.1} parent=5 // pred_check
        _
      $region34: #{ffnet_forward.1} parent=5 // pred_check_branch
        %168 = sbr.rel (%p165) target = $region36
      $region35: #{ffnet_forward.1} parent=5 // pred_region
        %s169 = ssub.s32 %s13, 1
        %p170 = scmp.lt.s32.totalorder %s18, 1
        %s171 = scalar_select %p170, %s18, 1
        %s172 = smul.addr %s171, 8
        %s173 = scalar_lea.vmem %s0, %s172
        %p174 = pneg %p39
        %p175 = pneg %p36
        %p176 = pneg %p60
        %p177 = pneg %p57
        %p178 = pneg %p81
        %p179 = pneg %p78
        %p180 = pneg %p102
        %p181 = pneg %p99
        %p182 = pneg %p128
        %p183 = pneg %p125
        %s184 = sand.u32 %s115, 1
        %s185 = scalar_lea.sflag [#allocation3], %s184
        %s186 = sand.u32 %s115, 1
        %s187 = smul.addr %s186, 8
        %s188 = scalar_lea.vmem [#allocation2], %s187
        %p189 = scmp.lt.s32.totalorder %s18, 1
        %s190 = scalar_select %p189, %s18, 1
        %s191 = smul.addr %s190, 8
        %s192 = scalar_lea.vmem %s0, %s191
        %v194 = vld [vmem:[%s192] sm:$0xff]
        %v195 = vpack.c.bf16 %v194, %v194
        %v196 = vld [vmem:[%s1] sm:$0xf]
        %v197 = vld [vmem:[%s1 + $0x4] sm:$0xf]
        %v198 = vld [vmem:[%s1 + $0x8] sm:$0xf]
        %v199 = vld [vmem:[%s1 + $0xc] sm:$0xf]
        %v204 = vunpack.c.l.b16 %v196
        %v205 = vunpack.c.l.b16 %v197
        %v206 = vunpack.c.l.b16 %v198
        %v207 = vunpack.c.l.b16 %v199
        %v208 = vpack.c.b16 %v205, %v204
        %v209 = vpack.c.b16 %v207, %v206
        %vm212 = vcmask 261120
        %v214 = vsel %vm212, %v195, 0
        %216 = vmatprep.subr.bf16.mxu0 0
        %217 = vmatpush1.bf16.msra.mxu0 %v208
        %218 = vmatprep.subr.bf16.mxu0 0
        %219 = vmatpush1.bf16.msra.mxu0 %v209
        %220 = vmatprep.subr.bf16.mxu0 0
        %221 = vmatpush1.bf16.msra.mxu0 0
        %222 = vmatprep.subr.bf16.mxu0 0
        %223 = vmatpush1.bf16.msra.mxu0 0
        %224 = vmatprep.subr.bf16.mxu0 0
        %225 = vmatpush1.bf16.msra.mxu0 0
        %226 = vmatprep.subr.bf16.mxu0 0
        %227 = vmatpush1.bf16.msra.mxu0 0
        %228 = vmatprep.subr.bf16.mxu0 0
        %229 = vmatpush1.bf16.msra.mxu0 0
        %230 = vmatprep.subr.bf16.mxu0 0
        %231 = vmatpush1.bf16.msra.mxu0 0
        %232 = vmatprep.subr.bf16.mxu0 0
        %233 = vmatpush1.bf16.msra.mxu0 0
        %234 = vmatprep.subr.bf16.mxu0 0
        %235 = vmatpush1.bf16.msra.mxu0 0
        %236 = vmatprep.subr.bf16.mxu0 0
        %237 = vmatpush1.bf16.msra.mxu0 0
        %238 = vmatprep.subr.bf16.mxu0 0
        %239 = vmatpush1.bf16.msra.mxu0 0
        %240 = vmatprep.subr.bf16.mxu0 0
        %241 = vmatpush1.bf16.msra.mxu0 0
        %242 = vmatprep.subr.bf16.mxu0 0
        %243 = vmatpush1.bf16.msra.mxu0 0
        %244 = vmatprep.subr.bf16.mxu0 0
        %245 = vmatpush1.bf16.msra.mxu0 0
        %246 = vmatprep.subr.bf16.mxu0 0
        %247 = vmatpush1.bf16.msra.mxu0 0
        %248 = vmatprep.mubr.bf16.mxu0 0
        %249 = vmatmul.mubr.bf16.gmra.mrb[0].mxu0 %v214
        %v250 = vpop.f32.mrb[0].mxu0
        %v251 = vadd.f32 0.0, %v250
        %v252 = vpop.f32.mrb[0].mxu0
        %v253 = vpop.f32.mrb[0].mxu0
        %v254 = vpop.f32.mrb[0].mxu0
        %255 = vdwg.mxu0
        %v256 = vmax.f32 %v251, 0.0
        %v257 = vpack.c.bf16 %v256, %v256
        %v258 = vld [vmem:[%s2] sm:$0xf]
        %v259 = vld [vmem:[%s2 + $0x4] sm:$0xf]
        %v260 = vld [vmem:[%s2 + $0x8] sm:$0xf]
        %v261 = vld [vmem:[%s2 + $0xc] sm:$0xf]
        %v262 = vld [vmem:[%s2 + $0x10] sm:$0xf]
        %v263 = vld [vmem:[%s2 + $0x14] sm:$0xf]
        %v264 = vld [vmem:[%s2 + $0x18] sm:$0xf]
        %v265 = vld [vmem:[%s2 + $0x1c] sm:$0xf]
        %v266 = vld [vmem:[%s2 + $0x20] sm:$0xf]
        %v267 = vld [vmem:[%s2 + $0x24] sm:$0xf]
        %v268 = vld [vmem:[%s2 + $0x28] sm:$0xf]
        %v269 = vld [vmem:[%s2 + $0x2c] sm:$0xf]
        %v270 = vld [vmem:[%s2 + $0x30] sm:$0xf]
        %v271 = vld [vmem:[%s2 + $0x34] sm:$0xf]
        %v272 = vld [vmem:[%s2 + $0x38] sm:$0xf]
        %v273 = vld [vmem:[%s2 + $0x3c] sm:$0xf]
        %v290 = vunpack.c.l.b16 %v258
        %v291 = vunpack.c.l.b16 %v259
        %v292 = vunpack.c.l.b16 %v260
        %v293 = vunpack.c.l.b16 %v261
        %v294 = vunpack.c.l.b16 %v262
        %v295 = vunpack.c.l.b16 %v263
        %v296 = vunpack.c.l.b16 %v264
        %v297 = vunpack.c.l.b16 %v265
        %v298 = vunpack.c.l.b16 %v266
        %v299 = vunpack.c.l.b16 %v267
        %v300 = vunpack.c.l.b16 %v268
        %v301 = vunpack.c.l.b16 %v269
        %v302 = vunpack.c.l.b16 %v270
        %v303 = vunpack.c.l.b16 %v271
        %v304 = vunpack.c.l.b16 %v272
        %v305 = vunpack.c.l.b16 %v273
        %v306 = vpack.c.b16 %v291, %v290
        %v307 = vpack.c.b16 %v293, %v292
        %v308 = vpack.c.b16 %v295, %v294
        %v309 = vpack.c.b16 %v297, %v296
        %v310 = vpack.c.b16 %v299, %v298
        %v311 = vpack.c.b16 %v301, %v300
        %v312 = vpack.c.b16 %v303, %v302
        %v313 = vpack.c.b16 %v305, %v304
        %322 = vmatprep.subr.bf16.mxu0 0
        %323 = vmatpush1.bf16.msra.mxu0 %v306
        %324 = vmatprep.subr.bf16.mxu0 0
        %325 = vmatpush1.bf16.msra.mxu0 %v307
        %326 = vmatprep.subr.bf16.mxu0 0
        %327 = vmatpush1.bf16.msra.mxu0 %v308
        %328 = vmatprep.subr.bf16.mxu0 0
        %329 = vmatpush1.bf16.msra.mxu0 %v309
        %330 = vmatprep.subr.bf16.mxu0 0
        %331 = vmatpush1.bf16.msra.mxu0 %v310
        %332 = vmatprep.subr.bf16.mxu0 0
        %333 = vmatpush1.bf16.msra.mxu0 %v311
        %334 = vmatprep.subr.bf16.mxu0 0
        %335 = vmatpush1.bf16.msra.mxu0 %v312
        %336 = vmatprep.subr.bf16.mxu0 0
        %337 = vmatpush1.bf16.msra.mxu0 %v313
        %338 = vmatprep.subr.bf16.mxu0 0
        %339 = vmatpush1.bf16.msra.mxu0 0
        %340 = vmatprep.subr.bf16.mxu0 0
        %341 = vmatpush1.bf16.msra.mxu0 0
        %342 = vmatprep.subr.bf16.mxu0 0
        %343 = vmatpush1.bf16.msra.mxu0 0
        %344 = vmatprep.subr.bf16.mxu0 0
        %345 = vmatpush1.bf16.msra.mxu0 0
        %346 = vmatprep.subr.bf16.mxu0 0
        %347 = vmatpush1.bf16.msra.mxu0 0
        %348 = vmatprep.subr.bf16.mxu0 0
        %349 = vmatpush1.bf16.msra.mxu0 0
        %350 = vmatprep.subr.bf16.mxu0 0
        %351 = vmatpush1.bf16.msra.mxu0 0
        %352 = vmatprep.subr.bf16.mxu0 0
        %353 = vmatpush1.bf16.msra.mxu0 0
        %354 = vmatprep.mubr.bf16.mxu0 0
        %355 = vmatmul.mubr.bf16.gmra.mrb[0].mxu0 %v257
        %v356 = vpop.f32.mrb[0].mxu0
        %v357 = vadd.f32 0.0, %v356
        %v358 = vpop.f32.mrb[0].mxu0
        %v359 = vpop.f32.mrb[0].mxu0
        %v360 = vpop.f32.mrb[0].mxu0
        %361 = vdwg.mxu0
        %v362 = vmax.f32 %v357, 0.0
        %v363 = vpack.c.bf16 %v362, %v362
        %v364 = vld [vmem:[%s3] sm:$0xf]
        %v365 = vld [vmem:[%s3 + $0x4] sm:$0xf]
        %v366 = vld [vmem:[%s3 + $0x8] sm:$0xf]
        %v367 = vld [vmem:[%s3 + $0xc] sm:$0xf]
        %v368 = vld [vmem:[%s3 + $0x10] sm:$0xf]
        %v369 = vld [vmem:[%s3 + $0x14] sm:$0xf]
        %v370 = vld [vmem:[%s3 + $0x18] sm:$0xf]
        %v371 = vld [vmem:[%s3 + $0x1c] sm:$0xf]
        %v372 = vld [vmem:[%s3 + $0x20] sm:$0xf]
        %v373 = vld [vmem:[%s3 + $0x24] sm:$0xf]
        %v374 = vld [vmem:[%s3 + $0x28] sm:$0xf]
        %v375 = vld [vmem:[%s3 + $0x2c] sm:$0xf]
        %v376 = vld [vmem:[%s3 + $0x30] sm:$0xf]
        %v377 = vld [vmem:[%s3 + $0x34] sm:$0xf]
        %v378 = vld [vmem:[%s3 + $0x38] sm:$0xf]
        %v379 = vld [vmem:[%s3 + $0x3c] sm:$0xf]
        %v396 = vunpack.c.l.b16 %v364
        %v397 = vunpack.c.l.b16 %v365
        %v398 = vunpack.c.l.b16 %v366
        %v399 = vunpack.c.l.b16 %v367
        %v400 = vunpack.c.l.b16 %v368
        %v401 = vunpack.c.l.b16 %v369
        %v402 = vunpack.c.l.b16 %v370
        %v403 = vunpack.c.l.b16 %v371
        %v404 = vunpack.c.l.b16 %v372
        %v405 = vunpack.c.l.b16 %v373
        %v406 = vunpack.c.l.b16 %v374
        %v407 = vunpack.c.l.b16 %v375
        %v408 = vunpack.c.l.b16 %v376
        %v409 = vunpack.c.l.b16 %v377
        %v410 = vunpack.c.l.b16 %v378
        %v411 = vunpack.c.l.b16 %v379
        %v412 = vpack.c.b16 %v397, %v396
        %v413 = vpack.c.b16 %v399, %v398
        %v414 = vpack.c.b16 %v401, %v400
        %v415 = vpack.c.b16 %v403, %v402
        %v416 = vpack.c.b16 %v405, %v404
        %v417 = vpack.c.b16 %v407, %v406
        %v418 = vpack.c.b16 %v409, %v408
        %v419 = vpack.c.b16 %v411, %v410
        %428 = vmatprep.subr.bf16.mxu0 0
        %429 = vmatpush1.bf16.msra.mxu0 %v412
        %430 = vmatprep.subr.bf16.mxu0 0
        %431 = vmatpush1.bf16.msra.mxu0 %v413
        %432 = vmatprep.subr.bf16.mxu0 0
        %433 = vmatpush1.bf16.msra.mxu0 %v414
        %434 = vmatprep.subr.bf16.mxu0 0
        %435 = vmatpush1.bf16.msra.mxu0 %v415
        %436 = vmatprep.subr.bf16.mxu0 0
        %437 = vmatpush1.bf16.msra.mxu0 %v416
        %438 = vmatprep.subr.bf16.mxu0 0
        %439 = vmatpush1.bf16.msra.mxu0 %v417
        %440 = vmatprep.subr.bf16.mxu0 0
        %441 = vmatpush1.bf16.msra.mxu0 %v418
        %442 = vmatprep.subr.bf16.mxu0 0
        %443 = vmatpush1.bf16.msra.mxu0 %v419
        %444 = vmatprep.subr.bf16.mxu0 0
        %445 = vmatpush1.bf16.msra.mxu0 0
        %446 = vmatprep.subr.bf16.mxu0 0
        %447 = vmatpush1.bf16.msra.mxu0 0
        %448 = vmatprep.subr.bf16.mxu0 0
        %449 = vmatpush1.bf16.msra.mxu0 0
        %450 = vmatprep.subr.bf16.mxu0 0
        %451 = vmatpush1.bf16.msra.mxu0 0
        %452 = vmatprep.subr.bf16.mxu0 0
        %453 = vmatpush1.bf16.msra.mxu0 0
        %454 = vmatprep.subr.bf16.mxu0 0
        %455 = vmatpush1.bf16.msra.mxu0 0
        %456 = vmatprep.subr.bf16.mxu0 0
        %457 = vmatpush1.bf16.msra.mxu0 0
        %458 = vmatprep.subr.bf16.mxu0 0
        %459 = vmatpush1.bf16.msra.mxu0 0
        %460 = vmatprep.mubr.bf16.mxu0 0
        %461 = vmatmul.mubr.bf16.gmra.mrb[0].mxu0 %v363
        %v462 = vpop.f32.mrb[0].mxu0
        %v463 = vadd.f32 0.0, %v462
        %v464 = vpop.f32.mrb[0].mxu0
        %v465 = vpop.f32.mrb[0].mxu0
        %v466 = vpop.f32.mrb[0].mxu0
        %467 = vdwg.mxu0
        %v468 = vmax.f32 %v463, 0.0
        %vm469 = vcmask 130048
        %470 = vst.msk [vmem:[%s188] sm:$0xff] %vm469, %v468
        %s471 = sand.u32 %s115, 1
        %s472 = scalar_lea.sflag [#allocation3], %s471
        %s473 = sand.u32 %s115, 1
        %s474 = smul.addr %s473, 8
        %s475 = scalar_lea.vmem [#allocation2], %s474
        // Predicated region
        $region37: #{ffnet_forward.1} parent=35 // pred_check
          %p476 = pneg %p125
        $region38: #{ffnet_forward.1} parent=35 // pred_check_branch
          %478 = sbr.rel (%p476) target = $region40
        $region39: #{ffnet_forward.1} parent=35 // pred_region
          %s480 = ssub.s32 128, 128
          %481 = vsyncadd %s472, %s480
          %s482 = smul.addr %s18, 128
          %s483 = scalar_lea.hbm %s4, %s482
          %s485 = sshll.u32 %s475, 4
          %s486 = int_to_ptr.vmem [resolvable:$true] %s485
          %488 = dma.vmem_to_hbm [thread:$0]  %s486, 128, %s483, %s472
        $region40: #{ffnet_forward.1} parent=35 // pred_fallthru
          _
      $region36: #{ffnet_forward.1} parent=5 // pred_fallthru
        _
      %p489 = scmp.le.s32.totalorder 2, %s13
      // Predicated region
      $region41: #{ffnet_forward.1} parent=5 // pred_check
        %p490 = pneg %p489
      $region42: #{ffnet_forward.1} parent=5 // pred_check_branch
        %492 = sbr.rel (%p490) target = $region44
      $region43: #{ffnet_forward.1} parent=5 // pred_region
        %s493 = ssub.s32 %s13, 2
        // Predicated region
        $region45: #{ffnet_forward.1} parent=43 // pred_check
          %p494 = pneg %p131
        $region46: #{ffnet_forward.1} parent=43 // pred_check_branch
          %496 = sbr.rel (%p494) target = $region48
        $region47: #{ffnet_forward.1} parent=43 // pred_region
          %s497 = sand.u32 %s116, 1
          %s498 = scalar_lea.sflag [#allocation3], %s497
          %s499 = sand.u32 %s116, 1
          %s500 = smul.addr %s499, 8
          %s501 = scalar_lea.vmem [#allocation2], %s500
          %502 = dma.done %s498, 128
        $region48: #{ffnet_forward.1} parent=43 // pred_fallthru
          _
      $region44: #{ffnet_forward.1} parent=5 // pred_fallthru
        _
    $region6: #{ffnet_forward.1} parent=1 // loop_footer
      %s17 = sadd.s32 1, %s13
    $region7: #{ffnet_forward.1} parent=1 // loop_footer_branch
      %12 = sbr.rel target = $region3
    $region8: #{ffnet_forward.1} parent=1 // loop_exit
      _
    %503 = vsyncpa [#allocation3], 1
    %s504 = scalar_lea.sflag [#allocation3], 1
    %505 = vsyncpa %s504, 1

</llo_original>
